<compile_context>
chip_gen: v6e
topology: v6e:2x2x1
jax: 0.10.0
libtpu: 0.0.40
codegen_flags: <defaults>
</compile_context>

<pallas_src>
import functools

import jax
import jax.numpy as jnp
from jax.experimental import pallas as pl
from jax.experimental.pallas import tpu as pltpu


def _round_up(x, m):
    return (x + m - 1) // m * m


def _largest_tile(total, target, unit=128):
    """Largest multiple of `unit` that divides `total` and is <= target."""
    target = max(unit, (target // unit) * unit)
    best = unit
    t = unit
    limit = min(target, total)
    while t <= limit:
        if total % t == 0:
            best = t
        t += unit
    return best


def _linear_kernel(x_ref, w_ref, s_ref, b_ref, o_ref):
    # x_ref: (tm, tk) f32      w_ref: (tk, tn) bf16/int8/f32
    # s_ref: (1, tn) f32       b_ref: (1, tn) f32
    # o_ref: (tm, tn) f32  (resident across the K axis -> acts as accumulator)
    k = pl.program_id(2)

    w = w_ref[...]
    if w.dtype == jnp.int8:
        # int8 is a storage/DMA format only: dequant mantissa to bf16 here,
        # per-output-channel scale is applied once at the finalize step.
        w = w.astype(jnp.bfloat16)
    x = x_ref[...].astype(w.dtype)  # in-kernel activation cast (f32 -> bf16)

    part = jnp.dot(x, w, preferred_element_type=jnp.float32)

    @pl.when(k == 0)
    def _():
        o_ref[...] = part

    @pl.when(k > 0)
    def _():
        o_ref[...] = o_ref[...] + part

    @pl.when(k == pl.num_programs(2) - 1)
    def _():
        o_ref[...] = o_ref[...] * s_ref[...] + b_ref[...]


def prepare_linear_params(weight, bias, *, weight_dtype=jnp.bfloat16, k_align=1024):
    """One-time parameter prep (call OUTSIDE the per-step forward).

    weight: [E, F] (PyTorch nn.Linear layout), bias: [E].
    weight_dtype:
      jnp.bfloat16 (default): halves weight HBM traffic vs f32, f32 accumulate.
      jnp.int8: per-output-channel symmetric quant; halves weight HBM traffic
        again (the kernel is weight-BW bound for realistic TF-IDF shapes).
      jnp.float32: strict-parity fallback (no bf16 activation quantisation).
    Returns (w_fe [Fp, Ep], scale2d [1, Ep] f32, bias2d [1, Ep] f32).
    Fp is padded to a multiple of min(k_align, round_up(F,128)) so the forward
    can always pick a large K tile that divides it (no tk-mismatch fragility).
    """
    weight = jnp.asarray(weight, jnp.float32)
    bias = jnp.asarray(bias, jnp.float32)
    E, F = weight.shape
    Ep = _round_up(E, 128)
    k_tile = min(k_align, _round_up(F, 128))
    Fp = _round_up(F, k_tile)

    w_t = jnp.zeros((Fp, Ep), jnp.float32).at[:F, :E].set(weight.T)
    b2d = jnp.zeros((1, Ep), jnp.float32).at[0, :E].set(bias)

    if weight_dtype == jnp.int8:
        amax = jnp.max(jnp.abs(w_t), axis=0, keepdims=True)          # [1, Ep]
        scale = jnp.where(amax > 0.0, amax / 127.0, 1.0)
        w_q = jnp.clip(jnp.round(w_t / scale), -127, 127).astype(jnp.int8)
        return w_q, scale.astype(jnp.float32), b2d

    return w_t.astype(weight_dtype), jnp.ones((1, Ep), jnp.float32), b2d


@functools.partial(jax.jit, static_argnames=("embedding_dim", "tm", "tn", "tk"))
def question_embedding_forward(tfidf_matrix, w_fe, scale2d, bias2d, *,
                               embedding_dim, tm=256, tn=256, tk=2048):
    """tfidf_matrix: [B, F] f32; (w_fe, scale2d, bias2d) from prepare_linear_params."""
    B, F = tfidf_matrix.shape
    Fp, Ep = w_fe.shape
    assert F <= Fp and embedding_dim <= Ep

    # ---- tile sizes --------------------------------------------------------
    # M: pad only to the 8-row sublane granule, never to 128.
    tm_eff = min(_round_up(tm, 8), _round_up(B, 8))
    Bp = _round_up(B, tm_eff)
    # K / N: largest 128-multiples that divide the (pre-)padded dims.
    tk_eff = _largest_tile(Fp, tk)
    tn_eff = _largest_tile(Ep, tn)
    # If there is only one M tile, ensure >=2 N tiles so both v7x TensorCores
    # (and megacore variants) get parallel work on the weight stream.
    if Bp // tm_eff == 1 and Ep >= 256:
        tn_eff = _largest_tile(Ep, min(tn_eff, Ep // 2))

    # ---- pad inputs (zero rows/cols contribute nothing to the dot) ---------
    x = tfidf_matrix.astype(jnp.float32)        # bf16 cast happens in-kernel
    if Bp != B or Fp != F:
        x = jnp.pad(x, ((0, Bp - B), (0, Fp - F)))

    grid = (Bp // tm_eff, Ep // tn_eff, Fp // tk_eff)  # K reduction innermost

    # ---- VMEM budget (tile footprint, capped vs. physical VMEM) ------------
    w_bytes = jnp.dtype(w_fe.dtype).itemsize
    need = (2 * tm_eff * tk_eff * 4            # x tiles (f32, double-buffered)
            + 2 * tk_eff * tn_eff * w_bytes    # W tiles (double-buffered)
            + 2 * tm_eff * tn_eff * 4          # output tile (pipeline buffers)
            + 4 * tn_eff * 4)                  # scale + bias rows
    try:
        vmem_cap = int(getattr(pltpu.get_tpu_info(), "vmem_capacity_bytes",
                               64 * 1024 * 1024))
    except Exception:
        vmem_cap = 64 * 1024 * 1024
    budget = (vmem_cap * 5) // 8               # ~40 MiB on v7x, ~80 MiB on v5e/v6e
    vmem_limit = int(min(budget, max(need + need // 4, 16 * 1024 * 1024)))

    out_padded = pl.pallas_call(
        _linear_kernel,
        out_shape=jax.ShapeDtypeStruct((Bp, Ep), jnp.float32),
        grid=grid,
        in_specs=[
            pl.BlockSpec((tm_eff, tk_eff), lambda i, j, k: (i, k)),   # x
            pl.BlockSpec((tk_eff, tn_eff), lambda i, j, k: (k, j)),   # W
            pl.BlockSpec((1, tn_eff), lambda i, j, k: (0, j)),        # scale
            pl.BlockSpec((1, tn_eff), lambda i, j, k: (0, j)),        # bias
        ],
        out_specs=pl.BlockSpec((tm_eff, tn_eff), lambda i, j, k: (i, j)),
        compiler_params=pltpu.CompilerParams(
            dimension_semantics=("parallel", "parallel", "arbitrary"),
            vmem_limit_bytes=vmem_limit,
        ),
    )(x, w_fe, scale2d, bias2d)

    return out_padded[:B, :embedding_dim]


if __name__ == "__main__":
    # Small, module-consistent shapes: batch=8 questions, num_features=32
    # (TF-IDF vocabulary), embedding_dim=128.
    B, NUM_FEATURES, EMBEDDING_DIM = 8, 32, 128

    key = jax.random.PRNGKey(0)
    k_x, k_w, k_b = jax.random.split(key, 3)

    # Deterministic synthetic parameters (PyTorch nn.Linear layout: [E, F]).
    bound = 1.0 / (NUM_FEATURES ** 0.5)
    weight = jax.random.uniform(
        k_w, (EMBEDDING_DIM, NUM_FEATURES), jnp.float32, -bound, bound)
    bias = jax.random.uniform(k_b, (EMBEDDING_DIM,), jnp.float32, -bound, bound)
    tfidf_matrix = jax.random.uniform(k_x, (B, NUM_FEATURES), jnp.float32)

    # High-precision reference == PyTorch nn.Linear forward in f32.
    ref = jnp.dot(tfidf_matrix, weight.T,
                  precision=jax.lax.Precision.HIGHEST) + bias

    # --- default path: bf16 weights, in-kernel bf16 activations, f32 acc ----
    w_fe, scale2d, bias2d = prepare_linear_params(weight, bias)
    out = question_embedding_forward(tfidf_matrix, w_fe, scale2d, bias2d,
                                     embedding_dim=EMBEDDING_DIM)
    out = jax.block_until_ready(out)
    assert out.shape == (B, EMBEDDING_DIM)
    err = float(jnp.max(jnp.abs(out - ref)))
    assert err < 3e-2, err

    # --- int8-weight path (halves the dominant weight HBM stream) -----------
    w_q, scale_q, bias_q = prepare_linear_params(weight, bias,
                                                 weight_dtype=jnp.int8)
    out_q = question_embedding_forward(tfidf_matrix, w_q, scale_q, bias_q,
                                       embedding_dim=EMBEDDING_DIM)
    out_q = jax.block_until_ready(out_q)
    err_q = float(jnp.max(jnp.abs(out_q - ref)))
    assert err_q < 8e-2, err_q

    # TODO(synk): use_bert=True path (HF BertTokenizer + BertModel forward) has
    # no Pallas equivalent in-script; only the TF-IDF + linear projection path
    # (the default nn.Linear branch) is implemented.
    print("KERNEL_OK")
</pallas_src>

<mosaic_0001>
module attributes {stable_mosaic.version = 11 : i64} {
  func.func @_linear_kernel(%arg0: i32, %arg1: i32, %arg2: i32, %arg3: memref<8x128xf32, #tpu.memory_space<vmem>>, %arg4: memref<128x128xbf16, #tpu.memory_space<vmem>>, %arg5: memref<1x128xf32, #tpu.memory_space<vmem>>, %arg6: memref<1x128xf32, #tpu.memory_space<vmem>>, %arg7: memref<8x128xf32, #tpu.memory_space<vmem>>) attributes {dimension_semantics = [#tpu.dimension_semantics<parallel>, #tpu.dimension_semantics<parallel>, #tpu.dimension_semantics<arbitrary>], iteration_bounds = array<i64: 1, 1, 1>, scalar_prefetch = 0 : i64, scratch_operands = 0 : i64, tpu.core_type = #tpu.core_type<tc>, window_params = [{transform_indices = @transform_0, window_bounds = array<i64: 8, 128>}, {transform_indices = @transform_1, window_bounds = array<i64: 128, 128>}, {transform_indices = @transform_2, window_bounds = array<i64: 1, 128>}, {transform_indices = @transform_3, window_bounds = array<i64: 1, 128>}, {transform_indices = @transform_4, window_bounds = array<i64: 8, 128>}]} {
    %c0 = arith.constant 0 : index
    %c0_0 = arith.constant 0 : index
    %0 = vector.load %arg4[%c0, %c0_0] : memref<128x128xbf16, #tpu.memory_space<vmem>>, vector<128x128xbf16>
    %c0_1 = arith.constant 0 : index
    %c0_2 = arith.constant 0 : index
    %1 = vector.load %arg3[%c0_1, %c0_2] : memref<8x128xf32, #tpu.memory_space<vmem>>, vector<8x128xf32>
    %2 = arith.truncf %1 : vector<8x128xf32> to vector<8x128xbf16>
    %cst = arith.constant dense<0.000000e+00> : vector<8x128xf32>
    %3 = tpu.matmul %2, %0, %cst {dimension_numbers = #tpu.dot_dimension_numbers<[1], [0], [0], [1], [0, 0, 1, 1], [], []>} : vector<8x128xbf16>, vector<128x128xbf16>, vector<8x128xf32> -> vector<8x128xf32>
    %c0_i32 = arith.constant 0 : i32
    %4 = arith.cmpi eq, %arg2, %c0_i32 : i32
    %5 = arith.extui %4 : i1 to i32
    %c0_i32_3 = arith.constant 0 : i32
    %6 = arith.cmpi ne, %5, %c0_i32_3 : i32
    scf.if %6 {
      %c0_8 = arith.constant 0 : index
      %c0_9 = arith.constant 0 : index
      %13 = vector.load %arg7[%c0_8, %c0_9] : memref<8x128xf32, #tpu.memory_space<vmem>>, vector<8x128xf32>
      tpu.vector_store %arg7[%c0_8, %c0_9], %3 {strides = array<i32>} : memref<8x128xf32, #tpu.memory_space<vmem>>, vector<8x128xf32>,
    } else {
    }
    %c0_i32_4 = arith.constant 0 : i32
    %7 = arith.cmpi sgt, %arg2, %c0_i32_4 : i32
    %8 = arith.extui %7 : i1 to i32
    %c0_i32_5 = arith.constant 0 : i32
    %9 = arith.cmpi ne, %8, %c0_i32_5 : i32
    scf.if %9 {
      %c0_8 = arith.constant 0 : index
      %c0_9 = arith.constant 0 : index
      %13 = vector.load %arg7[%c0_8, %c0_9] : memref<8x128xf32, #tpu.memory_space<vmem>>, vector<8x128xf32>
      %14 = arith.addf %13, %3 : vector<8x128xf32>
      %c0_10 = arith.constant 0 : index
      %c0_11 = arith.constant 0 : index
      %15 = vector.load %arg7[%c0_10, %c0_11] : memref<8x128xf32, #tpu.memory_space<vmem>>, vector<8x128xf32>
      tpu.vector_store %arg7[%c0_10, %c0_11], %14 {strides = array<i32>} : memref<8x128xf32, #tpu.memory_space<vmem>>, vector<8x128xf32>,
    } else {
    }
    %c0_i32_6 = arith.constant 0 : i32
    %10 = arith.cmpi eq, %arg2, %c0_i32_6 : i32
    %11 = arith.extui %10 : i1 to i32
    %c0_i32_7 = arith.constant 0 : i32
    %12 = arith.cmpi ne, %11, %c0_i32_7 : i32
    scf.if %12 {
      %c0_8 = arith.constant 0 : index
      %c0_9 = arith.constant 0 : index
      %13 = vector.load %arg7[%c0_8, %c0_9] : memref<8x128xf32, #tpu.memory_space<vmem>>, vector<8x128xf32>
      %c0_10 = arith.constant 0 : index
      %c0_11 = arith.constant 0 : index
      %14 = vector.load %arg5[%c0_10, %c0_11] : memref<1x128xf32, #tpu.memory_space<vmem>>, vector<1x128xf32>
      %15 = vector.broadcast %14 : vector<1x128xf32> to vector<8x128xf32>
      %16 = arith.mulf %13, %15 : vector<8x128xf32>
      %c0_12 = arith.constant 0 : index
      %c0_13 = arith.constant 0 : index
      %17 = vector.load %arg6[%c0_12, %c0_13] : memref<1x128xf32, #tpu.memory_space<vmem>>, vector<1x128xf32>
      %18 = vector.broadcast %17 : vector<1x128xf32> to vector<8x128xf32>
      %19 = arith.addf %16, %18 : vector<8x128xf32>
      %c0_14 = arith.constant 0 : index
      %c0_15 = arith.constant 0 : index
      %20 = vector.load %arg7[%c0_14, %c0_15] : memref<8x128xf32, #tpu.memory_space<vmem>>, vector<8x128xf32>
      tpu.vector_store %arg7[%c0_14, %c0_15], %19 {strides = array<i32>} : memref<8x128xf32, #tpu.memory_space<vmem>>, vector<8x128xf32>,
    } else {
    }
    return
  }
  func.func @transform_0(%arg0: i32, %arg1: i32, %arg2: i32) -> (i32, i32) {
    %c0_i32 = arith.constant 0 : i32
    return %arg0, %arg2 : i32, i32
  }
  func.func @transform_1(%arg0: i32, %arg1: i32, %arg2: i32) -> (i32, i32) {
    %c0_i32 = arith.constant 0 : i32
    return %arg2, %arg1 : i32, i32
  }
  func.func @transform_2(%arg0: i32, %arg1: i32, %arg2: i32) -> (i32, i32) {
    %c0_i32 = arith.constant 0 : i32
    %c0_i32_0 = arith.constant 0 : i32
    return %c0_i32, %arg1 : i32, i32
  }
  func.func @transform_3(%arg0: i32, %arg1: i32, %arg2: i32) -> (i32, i32) {
    %c0_i32 = arith.constant 0 : i32
    %c0_i32_0 = arith.constant 0 : i32
    return %c0_i32, %arg1 : i32, i32
  }
  func.func @transform_4(%arg0: i32, %arg1: i32, %arg2: i32) -> (i32, i32) {
    %c0_i32 = arith.constant 0 : i32
    return %arg0, %arg1 : i32, i32
  }
}

</mosaic_0001>

<llo_original>
// kernel: question_embedding_forward.1
$region0: #{question_embedding_forward.1}
  #allocation0 [shape = 'u32[]', space=smem, size = 0x4, offset = 0x4, fixed_abs, tag = 'smem constant byte address 0x4 - core index']
  #allocation1 [shape = 'u32[144,128]{1,0:T(1,128)}', space=vmem, size = 0x12000, scoped, tag = 'internal scratch']
  %s0 = inlined_call_operand.vmem [shape: f32[8,128], index: 0, kind: input, shape index: {}]
  %s1 = inlined_call_operand.hbm [shape: bf16[128,128], index: 1, kind: input, shape index: {}]
  %s2 = inlined_call_operand.vmem [shape: f32[1,128], index: 2, kind: input, shape index: {}]
  %s3 = inlined_call_operand.vmem [shape: f32[1,128], index: 3, kind: input, shape index: {}]
  %s4 = inlined_call_operand.hbm [shape: f32[8,128], index: 4, kind: output, shape index: {}]
  %s5 = sld [smem:[#allocation0]]
  $region42: #{question_embedding_forward.1} parent=0
    _
  %s7 = ssub.s32 1, %s5
  %s8 = scalar_select 0, %s7, %s5
  $region1: #{question_embedding_forward.1} parent=0
    #allocation2 [shape = 'u8[32768]{0}', space=vmem, size = 0x8000, scoped, tag = 'input window, operand 1, single buffered']
    #allocation3 [shape = 's32[1]{0}', space=sflag, size = 0x4, scoped, tag = 'scoped memory for question_embedding_forward.1']
    #allocation4 [shape = 's32[1]{0}', space=sflag, size = 0x4, scoped, tag = 'scoped memory for question_embedding_forward.1']
    #allocation5 [shape = 'u8[4096]{0}', space=vmem, size = 0x1000, scoped, tag = 'output window, operand 0, single buffered']
    %9 = vsyncpa [#allocation3], 0
    %10 = vsyncpa [#allocation4], 0
    // Predicated region
    $region2: #{question_embedding_forward.1} parent=1 // pred_check
      _
    $region3: #{question_embedding_forward.1} parent=1 // pred_check_branch
      %12 = sbr.rel (0) target = $region5
    $region4: #{question_embedding_forward.1} parent=1 // pred_region
      _
    $region5: #{question_embedding_forward.1} parent=1 // pred_fallthru
      _
    // Predicated region
    $region6: #{question_embedding_forward.1} parent=1 // pred_check
      _
    $region7: #{question_embedding_forward.1} parent=1 // pred_check_branch
      %14 = sbr.rel (0) target = $region9
    $region8: #{question_embedding_forward.1} parent=1 // pred_region
      %s16 = ssub.s32 1024, 1024
      %17 = vsyncadd [#allocation3], %s16
      %s18 = sshll.u32 [#allocation2], 4
      %s19 = int_to_ptr.vmem [resolvable:$true] %s18
      %24 = dma.hbm_to_vmem [thread:$0]  %s1, 1024, %s19, [#allocation3], 64, 64, 4
    $region9: #{question_embedding_forward.1} parent=1 // pred_fallthru
      _
    // Predicated region
    $region10: #{question_embedding_forward.1} parent=1 // pred_check
      _
    $region11: #{question_embedding_forward.1} parent=1 // pred_check_branch
      %26 = sbr.rel (0) target = $region13
    $region12: #{question_embedding_forward.1} parent=1 // pred_region
      _
    $region13: #{question_embedding_forward.1} parent=1 // pred_fallthru
      _
    // Predicated region
    $region14: #{question_embedding_forward.1} parent=1 // pred_check
      _
    $region15: #{question_embedding_forward.1} parent=1 // pred_check_branch
      %28 = sbr.rel (0) target = $region17
    $region16: #{question_embedding_forward.1} parent=1 // pred_region
      _
    $region17: #{question_embedding_forward.1} parent=1 // pred_fallthru
      _
    // Predicated region
    $region18: #{question_embedding_forward.1} parent=1 // pred_check
      _
    $region19: #{question_embedding_forward.1} parent=1 // pred_check_branch
      %30 = sbr.rel (0) target = $region21
    $region20: #{question_embedding_forward.1} parent=1 // pred_region
      %31 = dma.done [#allocation3], 1024
    $region21: #{question_embedding_forward.1} parent=1 // pred_fallthru
      _
    %v33 = vld [vmem:[#allocation2] sm:$0xf]
    %v34 = vld [vmem:[#allocation2 + $0x4] sm:$0xf]
    %v35 = vld [vmem:[#allocation2 + $0x8] sm:$0xf]
    %v36 = vld [vmem:[#allocation2 + $0xc] sm:$0xf]
    %v37 = vld [vmem:[#allocation2 + $0x10] sm:$0xf]
    %v38 = vld [vmem:[#allocation2 + $0x14] sm:$0xf]
    %v39 = vld [vmem:[#allocation2 + $0x18] sm:$0xf]
    %v40 = vld [vmem:[#allocation2 + $0x1c] sm:$0xf]
    %v41 = vld [vmem:[#allocation2 + $0x20] sm:$0xf]
    %v42 = vld [vmem:[#allocation2 + $0x24] sm:$0xf]
    %v43 = vld [vmem:[#allocation2 + $0x28] sm:$0xf]
    %v44 = vld [vmem:[#allocation2 + $0x2c] sm:$0xf]
    %v45 = vld [vmem:[#allocation2 + $0x30] sm:$0xf]
    %v46 = vld [vmem:[#allocation2 + $0x34] sm:$0xf]
    %v47 = vld [vmem:[#allocation2 + $0x38] sm:$0xf]
    %v48 = vld [vmem:[#allocation2 + $0x3c] sm:$0xf]
    %v49 = vld [vmem:[%s0] sm:$0xff]
    %v50 = vpack.c.bf16 %v49, %v49
    %v67 = vunpack.c.l.b16 %v33
    %v68 = vunpack.c.l.b16 %v34
    %v69 = vunpack.c.l.b16 %v35
    %v70 = vunpack.c.l.b16 %v36
    %v71 = vunpack.c.l.b16 %v37
    %v72 = vunpack.c.l.b16 %v38
    %v73 = vunpack.c.l.b16 %v39
    %v74 = vunpack.c.l.b16 %v40
    %v75 = vunpack.c.l.b16 %v41
    %v76 = vunpack.c.l.b16 %v42
    %v77 = vunpack.c.l.b16 %v43
    %v78 = vunpack.c.l.b16 %v44
    %v79 = vunpack.c.l.b16 %v45
    %v80 = vunpack.c.l.b16 %v46
    %v81 = vunpack.c.l.b16 %v47
    %v82 = vunpack.c.l.b16 %v48
    %v83 = vpack.c.b16 %v68, %v67
    %v84 = vpack.c.b16 %v70, %v69
    %v85 = vpack.c.b16 %v72, %v71
    %v86 = vpack.c.b16 %v74, %v73
    %v87 = vpack.c.b16 %v76, %v75
    %v88 = vpack.c.b16 %v78, %v77
    %v89 = vpack.c.b16 %v80, %v79
    %v90 = vpack.c.b16 %v82, %v81
    %99 = vmatprep.subr.bf16.mxu0 0
    %100 = vmatpush1.bf16.msra.mxu0 %v90
    %101 = vmatprep.subr.bf16.mxu0 0
    %102 = vmatpush1.bf16.msra.mxu0 %v89
    %103 = vmatprep.subr.bf16.mxu0 0
    %104 = vmatpush1.bf16.msra.mxu0 %v88
    %105 = vmatprep.subr.bf16.mxu0 0
    %106 = vmatpush1.bf16.msra.mxu0 %v87
    %107 = vmatprep.subr.bf16.mxu0 0
    %108 = vmatpush1.bf16.msra.mxu0 %v86
    %109 = vmatprep.subr.bf16.mxu0 0
    %110 = vmatpush1.bf16.msra.mxu0 %v85
    %111 = vmatprep.subr.bf16.mxu0 0
    %112 = vmatpush1.bf16.msra.mxu0 %v84
    %113 = vmatprep.subr.bf16.mxu0 0
    %114 = vmatpush1.bf16.msra.mxu0 %v83
    %115 = vmatprep.subr.bf16.mxu0 0
    %116 = vmatpush2.bf16.msra.mxu0 0
    %117 = vmatprep.subr.bf16.mxu0 0
    %118 = vmatpush2.bf16.msra.mxu0 0
    %119 = vmatprep.subr.bf16.mxu0 0
    %120 = vmatpush2.bf16.msra.mxu0 0
    %121 = vmatprep.subr.bf16.mxu0 0
    %122 = vmatpush2.bf16.msra.mxu0 0
    %123 = vmatprep.subr.bf16.mxu0 0
    %124 = vmatpush2.bf16.msra.mxu0 0
    %125 = vmatprep.subr.bf16.mxu0 0
    %126 = vmatpush2.bf16.msra.mxu0 0
    %127 = vmatprep.subr.bf16.mxu0 0
    %128 = vmatpush2.bf16.msra.mxu0 0
    %129 = vmatprep.subr.bf16.mxu0 0
    %130 = vmatpush2.bf16.msra.mxu0 0
    %131 = vmatprep.mubr.bf16.mxu0 0
    %132 = vmatmul.mubr.bf16.gmra.mxu0 %v50
    %v133 = vpop.f32.mrf.mxu0
    %v134 = vadd.f32 0.0, %v133
    %v135 = vpop.f32.mrf.mxu0
    %v136 = vpop.f32.mrf.mxu0
    %v137 = vpop.f32.mrf.mxu0
    %138 = vdwg.mxu0
    %p139 = scmp.eq.s32.totalorder 0, 0
    // Predicated region
    $region22: #{question_embedding_forward.1} parent=1 // pred_check
      %p140 = pneg %p139
    $region23: #{question_embedding_forward.1} parent=1 // pred_check_branch
      %142 = sbr.rel (%p140) target = $region25
    $region24: #{question_embedding_forward.1} parent=1 // pred_region
      %143 = vst [vmem:[#allocation5] sm:$0xff] %v134
    $region25: #{question_embedding_forward.1} parent=1 // pred_fallthru
      _
    %p144 = scmp.gt.s32.totalorder 0, 0
    // Predicated region
    $region26: #{question_embedding_forward.1} parent=1 // pred_check
      %p145 = pneg %p144
    $region27: #{question_embedding_forward.1} parent=1 // pred_check_branch
      %147 = sbr.rel (%p145) target = $region29
    $region28: #{question_embedding_forward.1} parent=1 // pred_region
      %v148 = vld [vmem:[#allocation5] sm:$0xff]
      %v149 = vadd.f32 %v148, %v134
      %150 = vst [vmem:[#allocation5] sm:$0xff] %v149
    $region29: #{question_embedding_forward.1} parent=1 // pred_fallthru
      _
    // Predicated region
    $region30: #{question_embedding_forward.1} parent=1 // pred_check
      %p151 = pneg %p139
    $region31: #{question_embedding_forward.1} parent=1 // pred_check_branch
      %153 = sbr.rel (%p151) target = $region33
    $region32: #{question_embedding_forward.1} parent=1 // pred_region
      %v154 = vld [vmem:[#allocation5] sm:$0xff]
      %v155 = vld [vmem:[%s2] sm:$0x1]
      %v157 = vlaneseq
      %v158 = vshrl.u32 %v157, 7
      %v159 = vsub.s32 0, %v158
      %v160 = vrot.slane %v155, %v159
      %v162 = vmul.f32 %v154, %v160
      %v163 = vld [vmem:[%s3] sm:$0x1]
      %v165 = vlaneseq
      %v166 = vshrl.u32 %v165, 7
      %v167 = vsub.s32 0, %v166
      %v168 = vrot.slane %v163, %v167
      %v170 = vadd.f32 %v162, %v168
      %171 = vst [vmem:[#allocation5] sm:$0xff] %v170
    $region33: #{question_embedding_forward.1} parent=1 // pred_fallthru
      _
    // Predicated region
    $region34: #{question_embedding_forward.1} parent=1 // pred_check
      _
    $region35: #{question_embedding_forward.1} parent=1 // pred_check_branch
      %173 = sbr.rel (0) target = $region37
    $region36: #{question_embedding_forward.1} parent=1 // pred_region
      %s175 = ssub.s32 128, 128
      %176 = vsyncadd [#allocation4], %s175
      %s178 = sshll.u32 [#allocation5], 4
      %s179 = int_to_ptr.vmem [resolvable:$true] %s178
      %181 = dma.vmem_to_hbm [thread:$0]  %s179, 128, %s4, [#allocation4]
    $region37: #{question_embedding_forward.1} parent=1 // pred_fallthru
      _
    // Predicated region
    $region38: #{question_embedding_forward.1} parent=1 // pred_check
      _
    $region39: #{question_embedding_forward.1} parent=1 // pred_check_branch
      %183 = sbr.rel (0) target = $region41
    $region40: #{question_embedding_forward.1} parent=1 // pred_region
      %184 = dma.done [#allocation4], 128
    $region41: #{question_embedding_forward.1} parent=1 // pred_fallthru
      _
    %185 = vsyncpa [#allocation3], 1
    %186 = vsyncpa [#allocation4], 1

</llo_original>
